<compile_context>
chip_gen: v5e
topology: v5e:2x2
jax: 0.10.0
libtpu: 0.0.40
codegen_flags: <defaults>
</compile_context>

<pallas_src>
import math

import jax
import jax.numpy as jnp
from jax.experimental import pallas as pl
from jax.experimental.pallas import tpu as pltpu

EMB = 288   # state embedding size (fixed by the module: Linear(288 + A, 256))
HID = 256


def _fd_kernel(x_ref, a_ref, w1e_ref, w1a_ref, b1_ref, w2_ref, b2_ref, o_ref):
    x = x_ref[...]                                   # (TM, EMB) f32
    act = a_ref[...]                                 # (TM, 1)   i32
    TM = x.shape[0]
    A = w1a_ref.shape[0]

    # Build the action one-hot in-kernel (iota compare).  Its contribution to
    # layer 1 is just onehot @ W1[EMB:], a tiny (TM, A)x(A, HID) matmul.
    lane = jax.lax.broadcasted_iota(jnp.int32, (TM, A), 1)
    onehot = (act == lane).astype(jnp.float32)       # (TM, A)

    # Layer 1: fused matmuls, bias added once per slab, then ReLU.
    h = jnp.dot(x, w1e_ref[...], preferred_element_type=jnp.float32)
    h = h + jnp.dot(onehot, w1a_ref[...], preferred_element_type=jnp.float32)
    h = h + b1_ref[...]
    h = jnp.maximum(h, 0.0)

    # Layer 2 (fd_out): single matmul + bias, no activation.
    o_ref[...] = (jnp.dot(h, w2_ref[...], preferred_element_type=jnp.float32)
                  + b2_ref[...])


def forward_dynamics_forward(state_embedding, action, params):
    """state_embedding: (T, N, 288) float, action: (T, N) int -> (T, N, 288) f32."""
    T, N, E = state_embedding.shape
    assert E == EMB
    w1, b1, w2, b2 = params
    A = w1.shape[0] - EMB
    w1e = w1[:EMB]          # (EMB, HID)
    w1a = w1[EMB:]          # (A,   HID)

    M = T * N
    x = state_embedding.reshape(M, EMB).astype(jnp.float32)
    a = action.reshape(M, 1).astype(jnp.int32)

    # Row tiling: one full-extent block for small M (no padding, grid=(1,)),
    # otherwise 512-row tiles (pad M up) sharded across cores via "parallel".
    if M <= 1024:
        TM, M_pad = M, M
    else:
        TM = 512
        M_pad = pl.cdiv(M, TM) * TM
        x = jnp.pad(x, ((0, M_pad - M), (0, 0)))
        a = jnp.pad(a, ((0, M_pad - M), (0, 0)))

    out = pl.pallas_call(
        _fd_kernel,
        out_shape=jax.ShapeDtypeStruct((M_pad, EMB), jnp.float32),
        grid_spec=pltpu.PrefetchScalarGridSpec(
            num_scalar_prefetch=0,
            grid=(M_pad // TM,),
            in_specs=[
                pl.BlockSpec((TM, EMB), lambda i: (i, 0)),   # state rows
                pl.BlockSpec((TM, 1), lambda i: (i, 0)),     # action ids
                pl.BlockSpec((EMB, HID), lambda i: (0, 0)),  # W1[:288]
                pl.BlockSpec((A, HID), lambda i: (0, 0)),    # W1[288:]
                pl.BlockSpec((1, HID), lambda i: (0, 0)),    # b1
                pl.BlockSpec((HID, EMB), lambda i: (0, 0)),  # W2
                pl.BlockSpec((1, EMB), lambda i: (0, 0)),    # b2
            ],
            out_specs=pl.BlockSpec((TM, EMB), lambda i: (i, 0)),
        ),
        compiler_params=pltpu.CompilerParams(
            dimension_semantics=("parallel",)),
    )(x, a, w1e, w1a, b1, w2, b2)

    return out[:M].reshape(T, N, EMB)


def init_params(key, num_actions):
    """Matches __init__: orthogonal weights (gain sqrt(2) then 1), zero biases."""
    k1, k2 = jax.random.split(key)
    gain_relu = math.sqrt(2.0)  # nn.init.calculate_gain('relu')
    # PyTorch Linear weight is (out, in); orthogonalize in that shape, then
    # transpose to (in, out) for x @ W.
    w1_t = jax.nn.initializers.orthogonal(scale=gain_relu)(
        k1, (HID, EMB + num_actions), jnp.float32)
    w2_t = jax.nn.initializers.orthogonal(scale=1.0)(k2, (EMB, HID), jnp.float32)
    w1 = jnp.transpose(w1_t)                 # (EMB + A, HID)
    w2 = jnp.transpose(w2_t)                 # (HID, EMB)
    b1 = jnp.zeros((1, HID), jnp.float32)    # nn.init.constant_(bias, 0)
    b2 = jnp.zeros((1, EMB), jnp.float32)
    return (w1, b1, w2, b2)


def reference_forward(state_embedding, action, params):
    """Pure-JAX reference mirroring the PyTorch forward (concat + 2 Linears)."""
    w1, b1, w2, b2 = params
    A = w1.shape[0] - EMB
    onehot = jax.nn.one_hot(action, A, dtype=jnp.float32)            # (T, N, A)
    inputs = jnp.concatenate(
        [state_embedding.astype(jnp.float32), onehot], axis=2)       # (T, N, 288+A)
    h = jnp.maximum(jnp.dot(inputs, w1) + b1.reshape(1, 1, -1), 0.0)
    return jnp.dot(h, w2) + b2.reshape(1, 1, -1)


if __name__ == "__main__":
    # Small shapes consistent with the module: seq T=8, batch N=2, num_actions=7.
    T, N, A = 8, 2, 7
    key = jax.random.PRNGKey(0)
    kx, ka, kp = jax.random.split(key, 3)

    state_embedding = jax.random.normal(kx, (T, N, EMB), jnp.float32)
    action = jax.random.randint(ka, (T, N), 0, A, jnp.int32)
    params = init_params(kp, A)

    out = forward_dynamics_forward(state_embedding, action, params)
    out = jax.block_until_ready(out)
    assert out.shape == (T, N, EMB) and out.dtype == jnp.float32

    ref = reference_forward(state_embedding, action, params)
    max_err = float(jnp.max(jnp.abs(out - ref)))
    assert jnp.allclose(out, ref, atol=2e-3, rtol=2e-3), f"max_err={max_err}"

    print("KERNEL_OK")
</pallas_src>

<mosaic_0001>
module attributes {stable_mosaic.version = 11 : i64} {
  func.func @_fd_kernel(%arg0: i32, %arg1: memref<16x288xf32, #tpu.memory_space<vmem>>, %arg2: memref<16x1xi32, #tpu.memory_space<vmem>>, %arg3: memref<288x256xf32, #tpu.memory_space<vmem>>, %arg4: memref<7x256xf32, #tpu.memory_space<vmem>>, %arg5: memref<1x256xf32, #tpu.memory_space<vmem>>, %arg6: memref<256x288xf32, #tpu.memory_space<vmem>>, %arg7: memref<1x288xf32, #tpu.memory_space<vmem>>, %arg8: memref<16x288xf32, #tpu.memory_space<vmem>>) attributes {dimension_semantics = [#tpu.dimension_semantics<parallel>], iteration_bounds = array<i64: 1>, scalar_prefetch = 0 : i64, scratch_operands = 0 : i64, tpu.core_type = #tpu.core_type<tc>, window_params = [{transform_indices = @transform_0, window_bounds = array<i64: 16, 288>}, {transform_indices = @transform_1, window_bounds = array<i64: 16, 1>}, {pipeline_mode = #tpu.pipeline_mode<synchronous>, transform_indices = @transform_2, window_bounds = array<i64: 288, 256>}, {pipeline_mode = #tpu.pipeline_mode<synchronous>, transform_indices = @transform_3, window_bounds = array<i64: 7, 256>}, {pipeline_mode = #tpu.pipeline_mode<synchronous>, transform_indices = @transform_4, window_bounds = array<i64: 1, 256>}, {pipeline_mode = #tpu.pipeline_mode<synchronous>, transform_indices = @transform_5, window_bounds = array<i64: 256, 288>}, {pipeline_mode = #tpu.pipeline_mode<synchronous>, transform_indices = @transform_6, window_bounds = array<i64: 1, 288>}, {transform_indices = @transform_7, window_bounds = array<i64: 16, 288>}]} {
    %c0 = arith.constant 0 : index
    %c0_0 = arith.constant 0 : index
    %0 = vector.load %arg1[%c0, %c0_0] : memref<16x288xf32, #tpu.memory_space<vmem>>, vector<16x288xf32>
    %c0_1 = arith.constant 0 : index
    %c0_2 = arith.constant 0 : index
    %1 = vector.load %arg2[%c0_1, %c0_2] : memref<16x1xi32, #tpu.memory_space<vmem>>, vector<16x1xi32>
    %2 = tpu.iota {dimensions = array<i32: 1>} : vector<16x7xi32>
    %3 = vector.broadcast %1 : vector<16x1xi32> to vector<16x7xi32>
    %4 = arith.cmpi eq, %3, %2 : vector<16x7xi32>
    %5 = arith.extui %4 : vector<16x7xi1> to vector<16x7xi32>
    %6 = arith.sitofp %5 : vector<16x7xi32> to vector<16x7xf32>
    %c0_3 = arith.constant 0 : index
    %c0_4 = arith.constant 0 : index
    %7 = vector.load %arg3[%c0_3, %c0_4] : memref<288x256xf32, #tpu.memory_space<vmem>>, vector<288x256xf32>
    %cst = arith.constant dense<0.000000e+00> : vector<16x256xf32>
    %8 = tpu.matmul %0, %7, %cst {dimension_numbers = #tpu.dot_dimension_numbers<[1], [0], [0], [1], [0, 0, 1, 1], [], []>} : vector<16x288xf32>, vector<288x256xf32>, vector<16x256xf32> -> vector<16x256xf32>
    %c0_5 = arith.constant 0 : index
    %c0_6 = arith.constant 0 : index
    %9 = vector.load %arg4[%c0_5, %c0_6] : memref<7x256xf32, #tpu.memory_space<vmem>>, vector<7x256xf32>
    %cst_7 = arith.constant dense<0.000000e+00> : vector<16x256xf32>
    %10 = tpu.matmul %6, %9, %cst_7 {dimension_numbers = #tpu.dot_dimension_numbers<[1], [0], [0], [1], [0, 0, 1, 1], [], []>} : vector<16x7xf32>, vector<7x256xf32>, vector<16x256xf32> -> vector<16x256xf32>
    %11 = arith.addf %8, %10 : vector<16x256xf32>
    %c0_8 = arith.constant 0 : index
    %c0_9 = arith.constant 0 : index
    %12 = vector.load %arg5[%c0_8, %c0_9] : memref<1x256xf32, #tpu.memory_space<vmem>>, vector<1x256xf32>
    %13 = vector.broadcast %12 : vector<1x256xf32> to vector<16x256xf32>
    %14 = arith.addf %11, %13 : vector<16x256xf32>
    %cst_10 = arith.constant 0.000000e+00 : f32
    %15 = vector.broadcast %cst_10 : f32 to vector<16x256xf32>
    %16 = arith.maximumf %14, %15 : vector<16x256xf32>
    %c0_11 = arith.constant 0 : index
    %c0_12 = arith.constant 0 : index
    %17 = vector.load %arg6[%c0_11, %c0_12] : memref<256x288xf32, #tpu.memory_space<vmem>>, vector<256x288xf32>
    %cst_13 = arith.constant dense<0.000000e+00> : vector<16x288xf32>
    %18 = tpu.matmul %16, %17, %cst_13 {dimension_numbers = #tpu.dot_dimension_numbers<[1], [0], [0], [1], [0, 0, 1, 1], [], []>} : vector<16x256xf32>, vector<256x288xf32>, vector<16x288xf32> -> vector<16x288xf32>
    %c0_14 = arith.constant 0 : index
    %c0_15 = arith.constant 0 : index
    %19 = vector.load %arg7[%c0_14, %c0_15] : memref<1x288xf32, #tpu.memory_space<vmem>>, vector<1x288xf32>
    %20 = vector.broadcast %19 : vector<1x288xf32> to vector<16x288xf32>
    %21 = arith.addf %18, %20 : vector<16x288xf32>
    %c0_16 = arith.constant 0 : index
    %c0_17 = arith.constant 0 : index
    %22 = vector.load %arg8[%c0_16, %c0_17] : memref<16x288xf32, #tpu.memory_space<vmem>>, vector<16x288xf32>
    tpu.vector_store %arg8[%c0_16, %c0_17], %21 {strides = array<i32>} : memref<16x288xf32, #tpu.memory_space<vmem>>, vector<16x288xf32>,
    return
  }
  func.func @transform_0(%arg0: i32) -> (i32, i32) {
    %c0_i32 = arith.constant 0 : i32
    %c0_i32_0 = arith.constant 0 : i32
    return %arg0, %c0_i32 : i32, i32
  }
  func.func @transform_1(%arg0: i32) -> (i32, i32) {
    %c0_i32 = arith.constant 0 : i32
    %c0_i32_0 = arith.constant 0 : i32
    return %arg0, %c0_i32 : i32, i32
  }
  func.func @transform_2(%arg0: i32) -> (i32, i32) {
    %c0_i32 = arith.constant 0 : i32
    %c0_i32_0 = arith.constant 0 : i32
    %c0_i32_1 = arith.constant 0 : i32
    return %c0_i32, %c0_i32_0 : i32, i32
  }
  func.func @transform_3(%arg0: i32) -> (i32, i32) {
    %c0_i32 = arith.constant 0 : i32
    %c0_i32_0 = arith.constant 0 : i32
    %c0_i32_1 = arith.constant 0 : i32
    return %c0_i32, %c0_i32_0 : i32, i32
  }
  func.func @transform_4(%arg0: i32) -> (i32, i32) {
    %c0_i32 = arith.constant 0 : i32
    %c0_i32_0 = arith.constant 0 : i32
    %c0_i32_1 = arith.constant 0 : i32
    return %c0_i32, %c0_i32_0 : i32, i32
  }
  func.func @transform_5(%arg0: i32) -> (i32, i32) {
    %c0_i32 = arith.constant 0 : i32
    %c0_i32_0 = arith.constant 0 : i32
    %c0_i32_1 = arith.constant 0 : i32
    return %c0_i32, %c0_i32_0 : i32, i32
  }
  func.func @transform_6(%arg0: i32) -> (i32, i32) {
    %c0_i32 = arith.constant 0 : i32
    %c0_i32_0 = arith.constant 0 : i32
    %c0_i32_1 = arith.constant 0 : i32
    return %c0_i32, %c0_i32_0 : i32, i32
  }
  func.func @transform_7(%arg0: i32) -> (i32, i32) {
    %c0_i32 = arith.constant 0 : i32
    %c0_i32_0 = arith.constant 0 : i32
    return %arg0, %c0_i32 : i32, i32
  }
}

</mosaic_0001>

<llo_original>
// kernel: tpu_custom_call.1
$region0: #{tpu_custom_call.1}
  #allocation0 [shape = 'u32[]', space=smem, size = 0x4, offset = 0x4, fixed_abs, tag = 'smem constant byte address 0x4 - core index']
  #allocation1 [shape = 'u32[72,128]{1,0:T(1,128)}', space=vmem, size = 0x9000, scoped, tag = 'internal scratch']
  %s0 = inlined_call_operand.vmem [shape: f32[16,288], index: 0, kind: input, shape index: {}]
  %s1 = inlined_call_operand.vmem [shape: s32[16,1], index: 1, kind: input, shape index: {}]
  %s2 = inlined_call_operand.vmem [shape: f32[288,256], index: 2, kind: input, shape index: {}]
  %s3 = inlined_call_operand.vmem [shape: f32[7,256], index: 3, kind: input, shape index: {}]
  %s4 = inlined_call_operand.vmem [shape: f32[1,256], index: 4, kind: input, shape index: {}]
  %s5 = inlined_call_operand.vmem [shape: f32[256,288], index: 5, kind: input, shape index: {}]
  %s6 = inlined_call_operand.vmem [shape: f32[1,288], index: 6, kind: input, shape index: {}]
  %s7 = inlined_call_operand.hbm [shape: f32[16,288], index: 7, kind: output, shape index: {}]
  %s8 = sld [smem:[#allocation0]]
  $region38: #{tpu_custom_call.1} parent=0
    _
  %s10 = ssub.s32 1, %s8
  %s11 = scalar_select 0, %s10, %s8
  $region1: #{tpu_custom_call.1} parent=0
    #allocation2 [shape = 'u8[24576]{0}', space=vmem, size = 0x6000, scoped, tag = 'output window, operand 0, single buffered']
    #allocation3 [shape = 's32[1]{0}', space=sflag, size = 0x4, scoped, tag = 'scoped memory for tpu_custom_call.1']
    %12 = vsyncpa [#allocation3], 0
    // Predicated region
    $region2: #{tpu_custom_call.1} parent=1 // pred_check
      _
    $region3: #{tpu_custom_call.1} parent=1 // pred_check_branch
      %14 = sbr.rel (0) target = $region5
    $region4: #{tpu_custom_call.1} parent=1 // pred_region
      _
    $region5: #{tpu_custom_call.1} parent=1 // pred_fallthru
      _
    // Predicated region
    $region6: #{tpu_custom_call.1} parent=1 // pred_check
      _
    $region7: #{tpu_custom_call.1} parent=1 // pred_check_branch
      %16 = sbr.rel (0) target = $region9
    $region8: #{tpu_custom_call.1} parent=1 // pred_region
      _
    $region9: #{tpu_custom_call.1} parent=1 // pred_fallthru
      _
    // Predicated region
    $region10: #{tpu_custom_call.1} parent=1 // pred_check
      _
    $region11: #{tpu_custom_call.1} parent=1 // pred_check_branch
      %18 = sbr.rel (0) target = $region13
    $region12: #{tpu_custom_call.1} parent=1 // pred_region
      _
    $region13: #{tpu_custom_call.1} parent=1 // pred_fallthru
      _
    // Predicated region
    $region14: #{tpu_custom_call.1} parent=1 // pred_check
      _
    $region15: #{tpu_custom_call.1} parent=1 // pred_check_branch
      %20 = sbr.rel (0) target = $region17
    $region16: #{tpu_custom_call.1} parent=1 // pred_region
      _
    $region17: #{tpu_custom_call.1} parent=1 // pred_fallthru
      _
    // Predicated region
    $region18: #{tpu_custom_call.1} parent=1 // pred_check
      _
    $region19: #{tpu_custom_call.1} parent=1 // pred_check_branch
      %22 = sbr.rel (0) target = $region21
    $region20: #{tpu_custom_call.1} parent=1 // pred_region
      _
    $region21: #{tpu_custom_call.1} parent=1 // pred_fallthru
      _
    // Predicated region
    $region22: #{tpu_custom_call.1} parent=1 // pred_check
      _
    $region23: #{tpu_custom_call.1} parent=1 // pred_check_branch
      %24 = sbr.rel (0) target = $region25
    $region24: #{tpu_custom_call.1} parent=1 // pred_region
      _
    $region25: #{tpu_custom_call.1} parent=1 // pred_fallthru
      _
    // Predicated region
    $region26: #{tpu_custom_call.1} parent=1 // pred_check
      _
    $region27: #{tpu_custom_call.1} parent=1 // pred_check_branch
      %26 = sbr.rel (0) target = $region29
    $region28: #{tpu_custom_call.1} parent=1 // pred_region
      _
    $region29: #{tpu_custom_call.1} parent=1 // pred_fallthru
      _
    %v27 = vld [vmem:[%s0] sm:$0xff]
    %v28 = vld [vmem:[%s0 + $0x8] sm:$0xff]
    %v29 = vld [vmem:[%s0 + $0x10] sm:$0xff]
    %v30 = vld [vmem:[%s0 + $0x18] sm:$0xff]
    %v31 = vld [vmem:[%s0 + $0x20] sm:$0xff]
    %v32 = vld [vmem:[%s0 + $0x28] sm:$0xff]
    %v33 = vld [vmem:[%s1] sm:$0xff]
    %v34 = vld [vmem:[%s1 + $0x8] sm:$0xff]
    %v35 = vlaneseq
    %v36 = vand.u32 %v35, 127
    %37 = vset.pattern.permute.xlu0 0
    %38 = vperm.xlu0 %37, %v33
    %v39 = vpop.permute.xlu0 %38
    %40 = vset.pattern.permute.xlu0 0
    %41 = vperm.xlu0 %40, %v34
    %v42 = vpop.permute.xlu0 %41
    %vm43 = vcmp.eq.s32.totalorder %v39, %v36
    %vm44 = vcmp.eq.s32.totalorder %v42, %v36
    %v45 = vsel %vm43, 1, 0
    %v46 = vsel %vm44, 1, 0
    %v47 = vcvt.s32.f32 %v45
    %v48 = vcvt.s32.f32 %v46
    %v49 = vld [vmem:[%s2] sm:$0xff]
    %v50 = vld [vmem:[%s2 + $0x8] sm:$0xff]
    %v51 = vld [vmem:[%s2 + $0x10] sm:$0xff]
    %v52 = vld [vmem:[%s2 + $0x18] sm:$0xff]
    %v53 = vld [vmem:[%s2 + $0x20] sm:$0xff]
    %v54 = vld [vmem:[%s2 + $0x28] sm:$0xff]
    %v55 = vld [vmem:[%s2 + $0x30] sm:$0xff]
    %v56 = vld [vmem:[%s2 + $0x38] sm:$0xff]
    %v57 = vld [vmem:[%s2 + $0x40] sm:$0xff]
    %v58 = vld [vmem:[%s2 + $0x48] sm:$0xff]
    %v59 = vld [vmem:[%s2 + $0x50] sm:$0xff]
    %v60 = vld [vmem:[%s2 + $0x58] sm:$0xff]
    %v61 = vld [vmem:[%s2 + $0x60] sm:$0xff]
    %v62 = vld [vmem:[%s2 + $0x68] sm:$0xff]
    %v63 = vld [vmem:[%s2 + $0x70] sm:$0xff]
    %v64 = vld [vmem:[%s2 + $0x78] sm:$0xff]
    %v65 = vld [vmem:[%s2 + $0x80] sm:$0xff]
    %v66 = vld [vmem:[%s2 + $0x88] sm:$0xff]
    %v67 = vld [vmem:[%s2 + $0x90] sm:$0xff]
    %v68 = vld [vmem:[%s2 + $0x98] sm:$0xff]
    %v69 = vld [vmem:[%s2 + $0xa0] sm:$0xff]
    %v70 = vld [vmem:[%s2 + $0xa8] sm:$0xff]
    %v71 = vld [vmem:[%s2 + $0xb0] sm:$0xff]
    %v72 = vld [vmem:[%s2 + $0xb8] sm:$0xff]
    %v73 = vld [vmem:[%s2 + $0xc0] sm:$0xff]
    %v74 = vld [vmem:[%s2 + $0xc8] sm:$0xff]
    %v75 = vld [vmem:[%s2 + $0xd0] sm:$0xff]
    %v76 = vld [vmem:[%s2 + $0xd8] sm:$0xff]
    %v77 = vld [vmem:[%s2 + $0xe0] sm:$0xff]
    %v78 = vld [vmem:[%s2 + $0xe8] sm:$0xff]
    %v79 = vld [vmem:[%s2 + $0xf0] sm:$0xff]
    %v80 = vld [vmem:[%s2 + $0xf8] sm:$0xff]
    %v81 = vld [vmem:[%s2 + $0x100] sm:$0xff]
    %v82 = vld [vmem:[%s2 + $0x108] sm:$0xff]
    %v83 = vld [vmem:[%s2 + $0x110] sm:$0xff]
    %v84 = vld [vmem:[%s2 + $0x118] sm:$0xff]
    %v85 = vld [vmem:[%s2 + $0x120] sm:$0xff]
    %v86 = vld [vmem:[%s2 + $0x128] sm:$0xff]
    %v87 = vld [vmem:[%s2 + $0x130] sm:$0xff]
    %v88 = vld [vmem:[%s2 + $0x138] sm:$0xff]
    %v89 = vld [vmem:[%s2 + $0x140] sm:$0xff]
    %v90 = vld [vmem:[%s2 + $0x148] sm:$0xff]
    %v91 = vld [vmem:[%s2 + $0x150] sm:$0xff]
    %v92 = vld [vmem:[%s2 + $0x158] sm:$0xff]
    %v93 = vld [vmem:[%s2 + $0x160] sm:$0xff]
    %v94 = vld [vmem:[%s2 + $0x168] sm:$0xff]
    %v95 = vld [vmem:[%s2 + $0x170] sm:$0xff]
    %v96 = vld [vmem:[%s2 + $0x178] sm:$0xff]
    %v97 = vld [vmem:[%s2 + $0x180] sm:$0xff]
    %v98 = vld [vmem:[%s2 + $0x188] sm:$0xff]
    %v99 = vld [vmem:[%s2 + $0x190] sm:$0xff]
    %v100 = vld [vmem:[%s2 + $0x198] sm:$0xff]
    %v101 = vld [vmem:[%s2 + $0x1a0] sm:$0xff]
    %v102 = vld [vmem:[%s2 + $0x1a8] sm:$0xff]
    %v103 = vld [vmem:[%s2 + $0x1b0] sm:$0xff]
    %v104 = vld [vmem:[%s2 + $0x1b8] sm:$0xff]
    %v105 = vld [vmem:[%s2 + $0x1c0] sm:$0xff]
    %v106 = vld [vmem:[%s2 + $0x1c8] sm:$0xff]
    %v107 = vld [vmem:[%s2 + $0x1d0] sm:$0xff]
    %v108 = vld [vmem:[%s2 + $0x1d8] sm:$0xff]
    %v109 = vld [vmem:[%s2 + $0x1e0] sm:$0xff]
    %v110 = vld [vmem:[%s2 + $0x1e8] sm:$0xff]
    %v111 = vld [vmem:[%s2 + $0x1f0] sm:$0xff]
    %v112 = vld [vmem:[%s2 + $0x1f8] sm:$0xff]
    %v113 = vld [vmem:[%s2 + $0x200] sm:$0xff]
    %v114 = vld [vmem:[%s2 + $0x208] sm:$0xff]
    %v115 = vld [vmem:[%s2 + $0x210] sm:$0xff]
    %v116 = vld [vmem:[%s2 + $0x218] sm:$0xff]
    %v117 = vld [vmem:[%s2 + $0x220] sm:$0xff]
    %v118 = vld [vmem:[%s2 + $0x228] sm:$0xff]
    %v119 = vld [vmem:[%s2 + $0x230] sm:$0xff]
    %v120 = vld [vmem:[%s2 + $0x238] sm:$0xff]
    %v121 = vld [vmem:[%s3] sm:$0x7f]
    %v122 = vld [vmem:[%s3 + $0x8] sm:$0x7f]
    %vm123 = vcmask 56320
    %v125 = vsel %vm123, %v47, 0
    %v128 = vsel %vm123, %v48, 0
    %vm130 = vcmask 1046528
    %v132 = vsel %vm130, %v121, 0
    %v135 = vsel %vm130, %v122, 0
    %137 = vmatpush.msra.mxu0 0.0
    %138 = vmatpush.msra.mxu0 0.0
    %139 = vmatpush.msra.mxu0 0.0
    %140 = vmatpush.msra.mxu0 0.0
    %141 = vmatpush.msra.mxu0 0.0
    %142 = vmatpush.msra.mxu0 0.0
    %143 = vmatpush.msra.mxu0 0.0
    %144 = vmatpush.msra.mxu0 0.0
    %145 = vmatpush.msra.mxu0 0.0
    %146 = vmatpush.msra.mxu0 0.0
    %147 = vmatpush.msra.mxu0 0.0
    %148 = vmatpush.msra.mxu0 0.0
    %149 = vmatpush.msra.mxu0 0.0
    %150 = vmatpush.msra.mxu0 0.0
    %151 = vmatpush.msra.mxu0 0.0
    %152 = vmatpush.msra.mxu0 %v132
    %153 = vmatmul.f32.gmra.mxu0 %v125
    %v154 = vpop.f32.mrf.mxu0
    %v155 = vadd.f32 0.0, %v154
    %156 = vmatmul.f32.gmra.mxu0 %v128
    %v157 = vpop.f32.mrf.mxu0
    %v158 = vadd.f32 0.0, %v157
    %159 = vdwg.mxu0
    %160 = vmatpush.msra.mxu0 0.0
    %161 = vmatpush.msra.mxu0 0.0
    %162 = vmatpush.msra.mxu0 0.0
    %163 = vmatpush.msra.mxu0 0.0
    %164 = vmatpush.msra.mxu0 0.0
    %165 = vmatpush.msra.mxu0 0.0
    %166 = vmatpush.msra.mxu0 0.0
    %167 = vmatpush.msra.mxu0 0.0
    %168 = vmatpush.msra.mxu0 0.0
    %169 = vmatpush.msra.mxu0 0.0
    %170 = vmatpush.msra.mxu0 0.0
    %171 = vmatpush.msra.mxu0 0.0
    %172 = vmatpush.msra.mxu0 0.0
    %173 = vmatpush.msra.mxu0 0.0
    %174 = vmatpush.msra.mxu0 0.0
    %175 = vmatpush.msra.mxu0 %v135
    %176 = vmatmul.f32.gmra.mxu0 %v125
    %v177 = vpop.f32.mrf.mxu0
    %v178 = vadd.f32 0.0, %v177
    %179 = vmatmul.f32.gmra.mxu0 %v128
    %v180 = vpop.f32.mrf.mxu0
    %v181 = vadd.f32 0.0, %v180
    %182 = vdwg.mxu0
    %vm183 = vcmask 261120
    %v185 = vsel %vm183, %v29, 0
    %v188 = vsel %vm183, %v32, 0
    %190 = vmatpush.msra.mxu0 %v79
    %191 = vmatpush.msra.mxu0 %v77
    %192 = vmatpush.msra.mxu0 %v75
    %193 = vmatpush.msra.mxu0 %v73
    %194 = vmatpush.msra.mxu0 %v71
    %195 = vmatpush.msra.mxu0 %v69
    %196 = vmatpush.msra.mxu0 %v67
    %197 = vmatpush.msra.mxu0 %v65
    %198 = vmatpush.msra.mxu0 %v63
    %199 = vmatpush.msra.mxu0 %v61
    %200 = vmatpush.msra.mxu0 %v59
    %201 = vmatpush.msra.mxu0 %v57
    %202 = vmatpush.msra.mxu0 %v55
    %203 = vmatpush.msra.mxu0 %v53
    %204 = vmatpush.msra.mxu0 %v51
    %205 = vmatpush.msra.mxu0 %v49
    %206 = vmatmul.f32.gmra.mxu0 %v27
    %v207 = vpop.f32.mrf.mxu0
    %v208 = vadd.f32 %v155, %v207
    %209 = vmatmul.f32.gmra.mxu0 %v30
    %v210 = vpop.f32.mrf.mxu0
    %v211 = vadd.f32 %v158, %v210
    %212 = vdwg.mxu0
    %213 = vmatpush.msra.mxu0 %v111
    %214 = vmatpush.msra.mxu0 %v109
    %215 = vmatpush.msra.mxu0 %v107
    %216 = vmatpush.msra.mxu0 %v105
    %217 = vmatpush.msra.mxu0 %v103
    %218 = vmatpush.msra.mxu0 %v101
    %219 = vmatpush.msra.mxu0 %v99
    %220 = vmatpush.msra.mxu0 %v97
    %221 = vmatpush.msra.mxu0 %v95
    %222 = vmatpush.msra.mxu0 %v93
    %223 = vmatpush.msra.mxu0 %v91
    %224 = vmatpush.msra.mxu0 %v89
    %225 = vmatpush.msra.mxu0 %v87
    %226 = vmatpush.msra.mxu0 %v85
    %227 = vmatpush.msra.mxu0 %v83
    %228 = vmatpush.msra.mxu0 %v81
    %229 = vmatmul.f32.gmra.mxu0 %v28
    %v230 = vpop.f32.mrf.mxu0
    %v231 = vadd.f32 %v208, %v230
    %232 = vmatmul.f32.gmra.mxu0 %v31
    %v233 = vpop.f32.mrf.mxu0
    %v234 = vadd.f32 %v211, %v233
    %235 = vdwg.mxu0
    %236 = vmatpush.msra.mxu0 0.0
    %237 = vmatpush.msra.mxu0 0.0
    %238 = vmatpush.msra.mxu0 0.0
    %239 = vmatpush.msra.mxu0 0.0
    %240 = vmatpush.msra.mxu0 0.0
    %241 = vmatpush.msra.mxu0 0.0
    %242 = vmatpush.msra.mxu0 0.0
    %243 = vmatpush.msra.mxu0 0.0
    %244 = vmatpush.msra.mxu0 0.0
    %245 = vmatpush.msra.mxu0 0.0
    %246 = vmatpush.msra.mxu0 0.0
    %247 = vmatpush.msra.mxu0 0.0
    %248 = vmatpush.msra.mxu0 %v119
    %249 = vmatpush.msra.mxu0 %v117
    %250 = vmatpush.msra.mxu0 %v115
    %251 = vmatpush.msra.mxu0 %v113
    %252 = vmatmul.f32.gmra.mxu0 %v185
    %v253 = vpop.f32.mrf.mxu0
    %v254 = vadd.f32 %v231, %v253
    %255 = vmatmul.f32.gmra.mxu0 %v188
    %v256 = vpop.f32.mrf.mxu0
    %v257 = vadd.f32 %v234, %v256
    %258 = vdwg.mxu0
    %259 = vmatpush.msra.mxu0 %v80
    %260 = vmatpush.msra.mxu0 %v78
    %261 = vmatpush.msra.mxu0 %v76
    %262 = vmatpush.msra.mxu0 %v74
    %263 = vmatpush.msra.mxu0 %v72
    %264 = vmatpush.msra.mxu0 %v70
    %265 = vmatpush.msra.mxu0 %v68
    %266 = vmatpush.msra.mxu0 %v66
    %267 = vmatpush.msra.mxu0 %v64
    %268 = vmatpush.msra.mxu0 %v62
    %269 = vmatpush.msra.mxu0 %v60
    %270 = vmatpush.msra.mxu0 %v58
    %271 = vmatpush.msra.mxu0 %v56
    %272 = vmatpush.msra.mxu0 %v54
    %273 = vmatpush.msra.mxu0 %v52
    %274 = vmatpush.msra.mxu0 %v50
    %275 = vmatmul.f32.gmra.mxu0 %v27
    %v276 = vpop.f32.mrf.mxu0
    %v277 = vadd.f32 %v178, %v276
    %278 = vmatmul.f32.gmra.mxu0 %v30
    %v279 = vpop.f32.mrf.mxu0
    %v280 = vadd.f32 %v181, %v279
    %281 = vdwg.mxu0
    %282 = vmatpush.msra.mxu0 %v112
    %283 = vmatpush.msra.mxu0 %v110
    %284 = vmatpush.msra.mxu0 %v108
    %285 = vmatpush.msra.mxu0 %v106
    %286 = vmatpush.msra.mxu0 %v104
    %287 = vmatpush.msra.mxu0 %v102
    %288 = vmatpush.msra.mxu0 %v100
    %289 = vmatpush.msra.mxu0 %v98
    %290 = vmatpush.msra.mxu0 %v96
    %291 = vmatpush.msra.mxu0 %v94
    %292 = vmatpush.msra.mxu0 %v92
    %293 = vmatpush.msra.mxu0 %v90
    %294 = vmatpush.msra.mxu0 %v88
    %295 = vmatpush.msra.mxu0 %v86
    %296 = vmatpush.msra.mxu0 %v84
    %297 = vmatpush.msra.mxu0 %v82
    %298 = vmatmul.f32.gmra.mxu0 %v28
    %v299 = vpop.f32.mrf.mxu0
    %v300 = vadd.f32 %v277, %v299
    %301 = vmatmul.f32.gmra.mxu0 %v31
    %v302 = vpop.f32.mrf.mxu0
    %v303 = vadd.f32 %v280, %v302
    %304 = vdwg.mxu0
    %305 = vmatpush.msra.mxu0 0.0
    %306 = vmatpush.msra.mxu0 0.0
    %307 = vmatpush.msra.mxu0 0.0
    %308 = vmatpush.msra.mxu0 0.0
    %309 = vmatpush.msra.mxu0 0.0
    %310 = vmatpush.msra.mxu0 0.0
    %311 = vmatpush.msra.mxu0 0.0
    %312 = vmatpush.msra.mxu0 0.0
    %313 = vmatpush.msra.mxu0 0.0
    %314 = vmatpush.msra.mxu0 0.0
    %315 = vmatpush.msra.mxu0 0.0
    %316 = vmatpush.msra.mxu0 0.0
    %317 = vmatpush.msra.mxu0 %v120
    %318 = vmatpush.msra.mxu0 %v118
    %319 = vmatpush.msra.mxu0 %v116
    %320 = vmatpush.msra.mxu0 %v114
    %321 = vmatmul.f32.gmra.mxu0 %v185
    %v322 = vpop.f32.mrf.mxu0
    %v323 = vadd.f32 %v300, %v322
    %324 = vmatmul.f32.gmra.mxu0 %v188
    %v325 = vpop.f32.mrf.mxu0
    %v326 = vadd.f32 %v303, %v325
    %327 = vdwg.mxu0
    %v328 = vld [vmem:[%s4] sm:$0x3]
    %v330 = vperm.slane %v328, 0
    %v331 = vperm.slane %v328, 1
    %v334 = vadd.f32 %v254, %v330
    %v335 = vadd.f32 %v323, %v331
    %v336 = vadd.f32 %v257, %v330
    %v337 = vadd.f32 %v326, %v331
    %v338 = vmax.f32 %v334, 0.0
    %v339 = vmax.f32 %v335, 0.0
    %v340 = vmax.f32 %v336, 0.0
    %v341 = vmax.f32 %v337, 0.0
    %v342 = vld [vmem:[%s5] sm:$0xff]
    %v343 = vld [vmem:[%s5 + $0x8] sm:$0xff]
    %v344 = vld [vmem:[%s5 + $0x10] sm:$0xff]
    %v345 = vld [vmem:[%s5 + $0x18] sm:$0xff]
    %v346 = vld [vmem:[%s5 + $0x20] sm:$0xff]
    %v347 = vld [vmem:[%s5 + $0x28] sm:$0xff]
    %v348 = vld [vmem:[%s5 + $0x30] sm:$0xff]
    %v349 = vld [vmem:[%s5 + $0x38] sm:$0xff]
    %v350 = vld [vmem:[%s5 + $0x40] sm:$0xff]
    %v351 = vld [vmem:[%s5 + $0x48] sm:$0xff]
    %v352 = vld [vmem:[%s5 + $0x50] sm:$0xff]
    %v353 = vld [vmem:[%s5 + $0x58] sm:$0xff]
    %v354 = vld [vmem:[%s5 + $0x60] sm:$0xff]
    %v355 = vld [vmem:[%s5 + $0x68] sm:$0xff]
    %v356 = vld [vmem:[%s5 + $0x70] sm:$0xff]
    %v357 = vld [vmem:[%s5 + $0x78] sm:$0xff]
    %v358 = vld [vmem:[%s5 + $0x80] sm:$0xff]
    %v359 = vld [vmem:[%s5 + $0x88] sm:$0xff]
    %v360 = vld [vmem:[%s5 + $0x90] sm:$0xff]
    %v361 = vld [vmem:[%s5 + $0x98] sm:$0xff]
    %v362 = vld [vmem:[%s5 + $0xa0] sm:$0xff]
    %v363 = vld [vmem:[%s5 + $0xa8] sm:$0xff]
    %v364 = vld [vmem:[%s5 + $0xb0] sm:$0xff]
    %v365 = vld [vmem:[%s5 + $0xb8] sm:$0xff]
    %v366 = vld [vmem:[%s5 + $0xc0] sm:$0xff]
    %v367 = vld [vmem:[%s5 + $0xc8] sm:$0xff]
    %v368 = vld [vmem:[%s5 + $0xd0] sm:$0xff]
    %v369 = vld [vmem:[%s5 + $0xd8] sm:$0xff]
    %v370 = vld [vmem:[%s5 + $0xe0] sm:$0xff]
    %v371 = vld [vmem:[%s5 + $0xe8] sm:$0xff]
    %v372 = vld [vmem:[%s5 + $0xf0] sm:$0xff]
    %v373 = vld [vmem:[%s5 + $0xf8] sm:$0xff]
    %v374 = vld [vmem:[%s5 + $0x100] sm:$0xff]
    %v375 = vld [vmem:[%s5 + $0x108] sm:$0xff]
    %v376 = vld [vmem:[%s5 + $0x110] sm:$0xff]
    %v377 = vld [vmem:[%s5 + $0x118] sm:$0xff]
    %v378 = vld [vmem:[%s5 + $0x120] sm:$0xff]
    %v379 = vld [vmem:[%s5 + $0x128] sm:$0xff]
    %v380 = vld [vmem:[%s5 + $0x130] sm:$0xff]
    %v381 = vld [vmem:[%s5 + $0x138] sm:$0xff]
    %v382 = vld [vmem:[%s5 + $0x140] sm:$0xff]
    %v383 = vld [vmem:[%s5 + $0x148] sm:$0xff]
    %v384 = vld [vmem:[%s5 + $0x150] sm:$0xff]
    %v385 = vld [vmem:[%s5 + $0x158] sm:$0xff]
    %v386 = vld [vmem:[%s5 + $0x160] sm:$0xff]
    %v387 = vld [vmem:[%s5 + $0x168] sm:$0xff]
    %v388 = vld [vmem:[%s5 + $0x170] sm:$0xff]
    %v389 = vld [vmem:[%s5 + $0x178] sm:$0xff]
    %v390 = vld [vmem:[%s5 + $0x180] sm:$0xff]
    %v391 = vld [vmem:[%s5 + $0x188] sm:$0xff]
    %v392 = vld [vmem:[%s5 + $0x190] sm:$0xff]
    %v393 = vld [vmem:[%s5 + $0x198] sm:$0xff]
    %v394 = vld [vmem:[%s5 + $0x1a0] sm:$0xff]
    %v395 = vld [vmem:[%s5 + $0x1a8] sm:$0xff]
    %v396 = vld [vmem:[%s5 + $0x1b0] sm:$0xff]
    %v397 = vld [vmem:[%s5 + $0x1b8] sm:$0xff]
    %v398 = vld [vmem:[%s5 + $0x1c0] sm:$0xff]
    %v399 = vld [vmem:[%s5 + $0x1c8] sm:$0xff]
    %v400 = vld [vmem:[%s5 + $0x1d0] sm:$0xff]
    %v401 = vld [vmem:[%s5 + $0x1d8] sm:$0xff]
    %v402 = vld [vmem:[%s5 + $0x1e0] sm:$0xff]
    %v403 = vld [vmem:[%s5 + $0x1e8] sm:$0xff]
    %v404 = vld [vmem:[%s5 + $0x1f0] sm:$0xff]
    %v405 = vld [vmem:[%s5 + $0x1f8] sm:$0xff]
    %v406 = vld [vmem:[%s5 + $0x200] sm:$0xff]
    %v407 = vld [vmem:[%s5 + $0x208] sm:$0xff]
    %v408 = vld [vmem:[%s5 + $0x210] sm:$0xff]
    %v409 = vld [vmem:[%s5 + $0x218] sm:$0xff]
    %v410 = vld [vmem:[%s5 + $0x220] sm:$0xff]
    %v411 = vld [vmem:[%s5 + $0x228] sm:$0xff]
    %v412 = vld [vmem:[%s5 + $0x230] sm:$0xff]
    %v413 = vld [vmem:[%s5 + $0x238] sm:$0xff]
    %v414 = vld [vmem:[%s5 + $0x240] sm:$0xff]
    %v415 = vld [vmem:[%s5 + $0x248] sm:$0xff]
    %v416 = vld [vmem:[%s5 + $0x250] sm:$0xff]
    %v417 = vld [vmem:[%s5 + $0x258] sm:$0xff]
    %v418 = vld [vmem:[%s5 + $0x260] sm:$0xff]
    %v419 = vld [vmem:[%s5 + $0x268] sm:$0xff]
    %v420 = vld [vmem:[%s5 + $0x270] sm:$0xff]
    %v421 = vld [vmem:[%s5 + $0x278] sm:$0xff]
    %v422 = vld [vmem:[%s5 + $0x280] sm:$0xff]
    %v423 = vld [vmem:[%s5 + $0x288] sm:$0xff]
    %v424 = vld [vmem:[%s5 + $0x290] sm:$0xff]
    %v425 = vld [vmem:[%s5 + $0x298] sm:$0xff]
    %v426 = vld [vmem:[%s5 + $0x2a0] sm:$0xff]
    %v427 = vld [vmem:[%s5 + $0x2a8] sm:$0xff]
    %v428 = vld [vmem:[%s5 + $0x2b0] sm:$0xff]
    %v429 = vld [vmem:[%s5 + $0x2b8] sm:$0xff]
    %v430 = vld [vmem:[%s5 + $0x2c0] sm:$0xff]
    %v431 = vld [vmem:[%s5 + $0x2c8] sm:$0xff]
    %v432 = vld [vmem:[%s5 + $0x2d0] sm:$0xff]
    %v433 = vld [vmem:[%s5 + $0x2d8] sm:$0xff]
    %v434 = vld [vmem:[%s5 + $0x2e0] sm:$0xff]
    %v435 = vld [vmem:[%s5 + $0x2e8] sm:$0xff]
    %v436 = vld [vmem:[%s5 + $0x2f0] sm:$0xff]
    %v437 = vld [vmem:[%s5 + $0x2f8] sm:$0xff]
    %v438 = vld [vmem:[%s6] sm:$0x7]
    %v440 = vperm.slane %v438, 0
    %v441 = vperm.slane %v438, 1
    %v442 = vperm.slane %v438, 2
    %446 = vmatpush.msra.mxu0 %v387
    %447 = vmatpush.msra.mxu0 %v384
    %448 = vmatpush.msra.mxu0 %v381
    %449 = vmatpush.msra.mxu0 %v378
    %450 = vmatpush.msra.mxu0 %v375
    %451 = vmatpush.msra.mxu0 %v372
    %452 = vmatpush.msra.mxu0 %v369
    %453 = vmatpush.msra.mxu0 %v366
    %454 = vmatpush.msra.mxu0 %v363
    %455 = vmatpush.msra.mxu0 %v360
    %456 = vmatpush.msra.mxu0 %v357
    %457 = vmatpush.msra.mxu0 %v354
    %458 = vmatpush.msra.mxu0 %v351
    %459 = vmatpush.msra.mxu0 %v348
    %460 = vmatpush.msra.mxu0 %v345
    %461 = vmatpush.msra.mxu0 %v342
    %462 = vmatmul.f32.gmra.mxu0 %v338
    %v463 = vpop.f32.mrf.mxu0
    %v464 = vadd.f32 %v440, %v463
    %465 = vmatmul.f32.gmra.mxu0 %v340
    %v466 = vpop.f32.mrf.mxu0
    %v467 = vadd.f32 %v440, %v466
    %468 = vdwg.mxu0
    %469 = vmatpush.msra.mxu0 %v435
    %470 = vmatpush.msra.mxu0 %v432
    %471 = vmatpush.msra.mxu0 %v429
    %472 = vmatpush.msra.mxu0 %v426
    %473 = vmatpush.msra.mxu0 %v423
    %474 = vmatpush.msra.mxu0 %v420
    %475 = vmatpush.msra.mxu0 %v417
    %476 = vmatpush.msra.mxu0 %v414
    %477 = vmatpush.msra.mxu0 %v411
    %478 = vmatpush.msra.mxu0 %v408
    %479 = vmatpush.msra.mxu0 %v405
    %480 = vmatpush.msra.mxu0 %v402
    %481 = vmatpush.msra.mxu0 %v399
    %482 = vmatpush.msra.mxu0 %v396
    %483 = vmatpush.msra.mxu0 %v393
    %484 = vmatpush.msra.mxu0 %v390
    %485 = vmatmul.f32.gmra.mxu0 %v339
    %v486 = vpop.f32.mrf.mxu0
    %v487 = vadd.f32 %v464, %v486
    %488 = vmatmul.f32.gmra.mxu0 %v341
    %v489 = vpop.f32.mrf.mxu0
    %v490 = vadd.f32 %v467, %v489
    %491 = vdwg.mxu0
    %492 = vmatpush.msra.mxu0 %v388
    %493 = vmatpush.msra.mxu0 %v385
    %494 = vmatpush.msra.mxu0 %v382
    %495 = vmatpush.msra.mxu0 %v379
    %496 = vmatpush.msra.mxu0 %v376
    %497 = vmatpush.msra.mxu0 %v373
    %498 = vmatpush.msra.mxu0 %v370
    %499 = vmatpush.msra.mxu0 %v367
    %500 = vmatpush.msra.mxu0 %v364
    %501 = vmatpush.msra.mxu0 %v361
    %502 = vmatpush.msra.mxu0 %v358
    %503 = vmatpush.msra.mxu0 %v355
    %504 = vmatpush.msra.mxu0 %v352
    %505 = vmatpush.msra.mxu0 %v349
    %506 = vmatpush.msra.mxu0 %v346
    %507 = vmatpush.msra.mxu0 %v343
    %508 = vmatmul.f32.gmra.mxu0 %v338
    %v509 = vpop.f32.mrf.mxu0
    %v510 = vadd.f32 %v441, %v509
    %511 = vmatmul.f32.gmra.mxu0 %v340
    %v512 = vpop.f32.mrf.mxu0
    %v513 = vadd.f32 %v441, %v512
    %514 = vdwg.mxu0
    %515 = vmatpush.msra.mxu0 %v436
    %516 = vmatpush.msra.mxu0 %v433
    %517 = vmatpush.msra.mxu0 %v430
    %518 = vmatpush.msra.mxu0 %v427
    %519 = vmatpush.msra.mxu0 %v424
    %520 = vmatpush.msra.mxu0 %v421
    %521 = vmatpush.msra.mxu0 %v418
    %522 = vmatpush.msra.mxu0 %v415
    %523 = vmatpush.msra.mxu0 %v412
    %524 = vmatpush.msra.mxu0 %v409
    %525 = vmatpush.msra.mxu0 %v406
    %526 = vmatpush.msra.mxu0 %v403
    %527 = vmatpush.msra.mxu0 %v400
    %528 = vmatpush.msra.mxu0 %v397
    %529 = vmatpush.msra.mxu0 %v394
    %530 = vmatpush.msra.mxu0 %v391
    %531 = vmatmul.f32.gmra.mxu0 %v339
    %v532 = vpop.f32.mrf.mxu0
    %v533 = vadd.f32 %v510, %v532
    %534 = vmatmul.f32.gmra.mxu0 %v341
    %v535 = vpop.f32.mrf.mxu0
    %v536 = vadd.f32 %v513, %v535
    %537 = vdwg.mxu0
    %538 = vmatpush.msra.mxu0 %v389
    %539 = vmatpush.msra.mxu0 %v386
    %540 = vmatpush.msra.mxu0 %v383
    %541 = vmatpush.msra.mxu0 %v380
    %542 = vmatpush.msra.mxu0 %v377
    %543 = vmatpush.msra.mxu0 %v374
    %544 = vmatpush.msra.mxu0 %v371
    %545 = vmatpush.msra.mxu0 %v368
    %546 = vmatpush.msra.mxu0 %v365
    %547 = vmatpush.msra.mxu0 %v362
    %548 = vmatpush.msra.mxu0 %v359
    %549 = vmatpush.msra.mxu0 %v356
    %550 = vmatpush.msra.mxu0 %v353
    %551 = vmatpush.msra.mxu0 %v350
    %552 = vmatpush.msra.mxu0 %v347
    %553 = vmatpush.msra.mxu0 %v344
    %554 = vmatmul.f32.gmra.mxu0 %v338
    %v555 = vpop.f32.mrf.mxu0
    %v556 = vadd.f32 %v442, %v555
    %557 = vmatmul.f32.gmra.mxu0 %v340
    %v558 = vpop.f32.mrf.mxu0
    %v559 = vadd.f32 %v442, %v558
    %560 = vdwg.mxu0
    %561 = vmatpush.msra.mxu0 %v437
    %562 = vmatpush.msra.mxu0 %v434
    %563 = vmatpush.msra.mxu0 %v431
    %564 = vmatpush.msra.mxu0 %v428
    %565 = vmatpush.msra.mxu0 %v425
    %566 = vmatpush.msra.mxu0 %v422
    %567 = vmatpush.msra.mxu0 %v419
    %568 = vmatpush.msra.mxu0 %v416
    %569 = vmatpush.msra.mxu0 %v413
    %570 = vmatpush.msra.mxu0 %v410
    %571 = vmatpush.msra.mxu0 %v407
    %572 = vmatpush.msra.mxu0 %v404
    %573 = vmatpush.msra.mxu0 %v401
    %574 = vmatpush.msra.mxu0 %v398
    %575 = vmatpush.msra.mxu0 %v395
    %576 = vmatpush.msra.mxu0 %v392
    %577 = vmatmul.f32.gmra.mxu0 %v339
    %v578 = vpop.f32.mrf.mxu0
    %v579 = vadd.f32 %v556, %v578
    %580 = vmatmul.f32.gmra.mxu0 %v341
    %v581 = vpop.f32.mrf.mxu0
    %v582 = vadd.f32 %v559, %v581
    %583 = vdwg.mxu0
    %584 = vst [vmem:[#allocation2] sm:$0xff] %v487
    %585 = vst [vmem:[#allocation2 + $0x8] sm:$0xff] %v533
    %586 = vst.msk [vmem:[#allocation2 + $0x10] sm:$0xff] %vm183, %v579
    %587 = vst [vmem:[#allocation2 + $0x18] sm:$0xff] %v490
    %588 = vst [vmem:[#allocation2 + $0x20] sm:$0xff] %v536
    %589 = vst.msk [vmem:[#allocation2 + $0x28] sm:$0xff] %vm183, %v582
    // Predicated region
    $region30: #{tpu_custom_call.1} parent=1 // pred_check
      _
    $region31: #{tpu_custom_call.1} parent=1 // pred_check_branch
      %591 = sbr.rel (0) target = $region33
    $region32: #{tpu_custom_call.1} parent=1 // pred_region
      %593 = vsyncadd [#allocation3], 0
      %s594 = sshll.u32 [#allocation2], 4
      %s595 = int_to_ptr.vmem [resolvable:$true] %s594
      %s596 = sshll.u32 %s7, 4
      %s597 = int_to_ptr.hbm [resolvable:$true] %s596
      %602 = dma.vmem_to_hbm [thread:$0]  %s595, 768, %s597, [#allocation3], 384, 384, 24
    $region33: #{tpu_custom_call.1} parent=1 // pred_fallthru
      _
    // Predicated region
    $region34: #{tpu_custom_call.1} parent=1 // pred_check
      _
    $region35: #{tpu_custom_call.1} parent=1 // pred_check_branch
      %604 = sbr.rel (0) target = $region37
    $region36: #{tpu_custom_call.1} parent=1 // pred_region
      %606 = dma.done [#allocation3], 768
    $region37: #{tpu_custom_call.1} parent=1 // pred_fallthru
      _
    %607 = vsyncpa [#allocation3], 1

</llo_original>
